<compile_context>
chip_gen: v7x
topology: tpu7x:2x2x1
jax: 0.10.0
libtpu: 0.0.40
codegen_flags: <defaults>
</compile_context>

<pallas_src>
import numpy as np
import jax
import jax.numpy as jnp
from jax.experimental import pallas as pl
from jax.experimental.pallas import tpu as pltpu


# ---------------------------------------------------------------------------
# Fused SE kernel: TB batch elements per grid step, everything in VMEM.
# ---------------------------------------------------------------------------
def _se_kernel(x_ref, w1t_ref, w2t_ref, o_ref):
    # x_ref  : (TB, C, HWp)  activations, spatial on lanes (zero-padded > HW)
    # w1t_ref: (C, Cr)       fc1.weight.T pre-scaled by 1/HW  (bias=False)
    # w2t_ref: (Cr, C)       fc2.weight.T                     (bias=False)
    # o_ref  : (TB, C, HWp)
    xf = x_ref[...].astype(jnp.float32)

    # Global average pool: the 1/HW is folded into w1t, and the zero-padded
    # lanes contribute nothing to the sum, so this is exact.
    pooled = jnp.sum(xf, axis=-1)                                    # (TB, C)

    # Squeeze: (TB, C) @ (C, Cr) -> ReLU.
    h = jnp.dot(pooled, w1t_ref[...], preferred_element_type=jnp.float32)
    h = jnp.maximum(h, 0.0)

    # Excite: (TB, Cr) @ (Cr, C) -> sigmoid.
    s = jnp.dot(h, w2t_ref[...], preferred_element_type=jnp.float32)
    s = jax.nn.sigmoid(s)                                            # (TB, C)

    # Channel-wise rescale; lane-dense store.
    o_ref[...] = (xf * s[:, :, None]).astype(o_ref.dtype)


# ---------------------------------------------------------------------------
# Wrapper: NCHW in / NCHW out (matches the PyTorch module).
# ---------------------------------------------------------------------------
def se_layer(x, w1, w2, *, block_target_bytes=2 << 20):
    """x: (B, C, H, W); w1: (C//r, C); w2: (C, C//r). Returns (B, C, H, W)."""
    B, C, H, W = x.shape
    HW = H * W
    Cr = w1.shape[0]
    itemsize = jnp.dtype(x.dtype).itemsize

    # Lane-dense spatial axis: pad H*W up to a multiple of 128 if needed.
    HWp = ((HW + 127) // 128) * 128
    x2 = x.reshape(B, C, HW)
    if HWp != HW:
        x2 = jnp.pad(x2, ((0, 0), (0, 0), (0, HWp - HW)))

    # Batch-coarsened blocks: ~block_target_bytes of x per grid step, but keep
    # >=4 grid steps (2 per v7x TensorCore) when blocks stay >= 512 KiB.
    per_elem = C * HWp * itemsize
    tb = max(1, min(B, block_target_bytes // max(per_elem, 1)))
    while tb > 1 and pl.cdiv(B, tb) < 4 and (tb // 2) * per_elem >= (512 << 10):
        tb //= 2

    Bp = pl.cdiv(B, tb) * tb
    if Bp != B:
        x2 = jnp.pad(x2, ((0, Bp - B), (0, 0), (0, 0)))

    # Fold 1/HW of the average pool into fc1's weight and pre-transpose both
    # weights host-side so the kernel runs plain GEMMs (no in-kernel transpose).
    w1t = (w1.astype(jnp.float32) * (1.0 / HW)).T                    # (C, Cr)
    w2t = w2.astype(jnp.float32).T                                   # (Cr, C)

    # Raise the scoped-VMEM limit only if our double-buffered working set
    # exceeds the most conservative default (16 MiB on v5e).
    block_bytes = tb * per_elem
    vmem_needed = 4 * block_bytes + 2 * 4 * (w1t.size + w2t.size) + (1 << 20)
    vmem_limit = int(vmem_needed) if vmem_needed > (16 << 20) else None

    out = pl.pallas_call(
        _se_kernel,
        out_shape=jax.ShapeDtypeStruct((Bp, C, HWp), x.dtype),
        grid=(Bp // tb,),
        in_specs=[
            pl.BlockSpec((tb, C, HWp), lambda b: (b, 0, 0)),
            pl.BlockSpec((C, Cr), lambda b: (0, 0)),   # tiny, VMEM-resident
            pl.BlockSpec((Cr, C), lambda b: (0, 0)),
        ],
        out_specs=pl.BlockSpec((tb, C, HWp), lambda b: (b, 0, 0)),
        compiler_params=pltpu.CompilerParams(
            dimension_semantics=("parallel",),   # batch blocks are independent
            vmem_limit_bytes=vmem_limit,
        ),
    )(x2, w1t, w2t)

    return out[:B, :, :HW].reshape(B, C, H, W)


# ---------------------------------------------------------------------------
# Deterministic synthetic params (PyTorch Linear default uniform fan-in init).
# ---------------------------------------------------------------------------
def init_params(key, channel, reduction=16):
    cr = channel // reduction
    k1, k2 = jax.random.split(key)
    b1 = 1.0 / np.sqrt(channel)
    b2 = 1.0 / np.sqrt(cr)
    w1 = jax.random.uniform(k1, (cr, channel), jnp.float32, -b1, b1)  # fc1.weight
    w2 = jax.random.uniform(k2, (channel, cr), jnp.float32, -b2, b2)  # fc2.weight
    return w1, w2


if __name__ == "__main__":
    key = jax.random.PRNGKey(0)
    kx, kp = jax.random.split(key)

    B, C, H, W = 2, 64, 16, 16          # reduction=16 -> squeeze width 4
    x = jax.random.normal(kx, (B, C, H, W), jnp.float32)
    w1, w2 = init_params(kp, C, reduction=16)

    fwd = jax.jit(se_layer)
    out = jax.block_until_ready(fwd(x, w1, w2))

    # Pure-JAX reference (mirrors the PyTorch forward exactly).
    y = jnp.mean(x, axis=(2, 3))                         # AdaptiveAvgPool2d(1)
    h = jnp.maximum(y @ w1.T, 0.0)                       # Linear(no bias) + ReLU
    s = jax.nn.sigmoid(h @ w2.T)                         # Linear(no bias) + Sigmoid
    ref = x * s[:, :, None, None]

    assert out.shape == (B, C, H, W), out.shape
    assert bool(jnp.all(jnp.isfinite(out)))
    assert jnp.allclose(out, ref, atol=1e-5, rtol=1e-5)
    print("KERNEL_OK")
</pallas_src>

<mosaic_0001>
module attributes {stable_mosaic.version = 11 : i64} {
  func.func @_se_kernel(%arg0: i32, %arg1: memref<2x64x256xf32, #tpu.memory_space<vmem>>, %arg2: memref<64x4xf32, #tpu.memory_space<vmem>>, %arg3: memref<4x64xf32, #tpu.memory_space<vmem>>, %arg4: memref<2x64x256xf32, #tpu.memory_space<vmem>>) attributes {dimension_semantics = [#tpu.dimension_semantics<parallel>], iteration_bounds = array<i64: 1>, scalar_prefetch = 0 : i64, scratch_operands = 0 : i64, tpu.core_type = #tpu.core_type<tc>, window_params = [{transform_indices = @transform_0, window_bounds = array<i64: 2, 64, 256>}, {pipeline_mode = #tpu.pipeline_mode<synchronous>, transform_indices = @transform_1, window_bounds = array<i64: 64, 4>}, {pipeline_mode = #tpu.pipeline_mode<synchronous>, transform_indices = @transform_2, window_bounds = array<i64: 4, 64>}, {transform_indices = @transform_3, window_bounds = array<i64: 2, 64, 256>}]} {
    %c0 = arith.constant 0 : index
    %c0_0 = arith.constant 0 : index
    %c0_1 = arith.constant 0 : index
    %0 = vector.load %arg1[%c0, %c0_0, %c0_1] : memref<2x64x256xf32, #tpu.memory_space<vmem>>, vector<2x64x256xf32>
    %cst = arith.constant dense<0.000000e+00> : vector<2x64xf32>
    %1 = vector.multi_reduction <add>, %0, %cst [2] : vector<2x64x256xf32> to vector<2x64xf32>
    %c0_2 = arith.constant 0 : index
    %c0_3 = arith.constant 0 : index
    %2 = vector.load %arg2[%c0_2, %c0_3] : memref<64x4xf32, #tpu.memory_space<vmem>>, vector<64x4xf32>
    %cst_4 = arith.constant dense<0.000000e+00> : vector<2x4xf32>
    %3 = tpu.matmul %1, %2, %cst_4 {dimension_numbers = #tpu.dot_dimension_numbers<[1], [0], [0], [1], [0, 0, 1, 1], [], []>} : vector<2x64xf32>, vector<64x4xf32>, vector<2x4xf32> -> vector<2x4xf32>
    %cst_5 = arith.constant 0.000000e+00 : f32
    %4 = vector.broadcast %cst_5 : f32 to vector<2x4xf32>
    %5 = arith.maximumf %3, %4 : vector<2x4xf32>
    %c0_6 = arith.constant 0 : index
    %c0_7 = arith.constant 0 : index
    %6 = vector.load %arg3[%c0_6, %c0_7] : memref<4x64xf32, #tpu.memory_space<vmem>>, vector<4x64xf32>
    %cst_8 = arith.constant dense<0.000000e+00> : vector<2x64xf32>
    %7 = tpu.matmul %5, %6, %cst_8 {dimension_numbers = #tpu.dot_dimension_numbers<[1], [0], [0], [1], [0, 0, 1, 1], [], []>} : vector<2x4xf32>, vector<4x64xf32>, vector<2x64xf32> -> vector<2x64xf32>
    %8 = arith.negf %7 : vector<2x64xf32>
    %9 = math.exp %8 : vector<2x64xf32>
    %cst_9 = arith.constant 1.000000e+00 : f32
    %10 = vector.broadcast %cst_9 : f32 to vector<2x64xf32>
    %11 = arith.addf %10, %9 : vector<2x64xf32>
    %12 = arith.divf %10, %11 : vector<2x64xf32>
    %13 = vector.shape_cast %12 : vector<2x64xf32> to vector<2x64x1xf32>
    %14 = vector.broadcast %13 : vector<2x64x1xf32> to vector<2x64x256xf32>
    %15 = arith.mulf %0, %14 : vector<2x64x256xf32>
    %c0_10 = arith.constant 0 : index
    %c0_11 = arith.constant 0 : index
    %c0_12 = arith.constant 0 : index
    %16 = vector.load %arg4[%c0_10, %c0_11, %c0_12] : memref<2x64x256xf32, #tpu.memory_space<vmem>>, vector<2x64x256xf32>
    tpu.vector_store %arg4[%c0_10, %c0_11, %c0_12], %15 {strides = array<i32>} : memref<2x64x256xf32, #tpu.memory_space<vmem>>, vector<2x64x256xf32>,
    return
  }
  func.func @transform_0(%arg0: i32) -> (i32, i32, i32) {
    %c0_i32 = arith.constant 0 : i32
    %c0_i32_0 = arith.constant 0 : i32
    %c0_i32_1 = arith.constant 0 : i32
    return %arg0, %c0_i32, %c0_i32_0 : i32, i32, i32
  }
  func.func @transform_1(%arg0: i32) -> (i32, i32) {
    %c0_i32 = arith.constant 0 : i32
    %c0_i32_0 = arith.constant 0 : i32
    %c0_i32_1 = arith.constant 0 : i32
    return %c0_i32, %c0_i32_0 : i32, i32
  }
  func.func @transform_2(%arg0: i32) -> (i32, i32) {
    %c0_i32 = arith.constant 0 : i32
    %c0_i32_0 = arith.constant 0 : i32
    %c0_i32_1 = arith.constant 0 : i32
    return %c0_i32, %c0_i32_0 : i32, i32
  }
  func.func @transform_3(%arg0: i32) -> (i32, i32, i32) {
    %c0_i32 = arith.constant 0 : i32
    %c0_i32_0 = arith.constant 0 : i32
    %c0_i32_1 = arith.constant 0 : i32
    return %arg0, %c0_i32, %c0_i32_0 : i32, i32, i32
  }
}

</mosaic_0001>

<llo_original>
// kernel: se_layer.1
$region0: #{se_layer.1}
  #allocation0 [shape = 'u32[]', space=smem, size = 0x4, offset = 0x4, fixed_abs, tag = 'smem constant byte address 0x4 - core index']
  #allocation1 [shape = 'u32[144,128]{1,0:T(1,128)}', space=vmem, size = 0x12000, scoped, tag = 'internal scratch']
  %s0 = inlined_call_operand.vmem [shape: f32[2,64,256], index: 0, kind: input, shape index: {}]
  %s1 = inlined_call_operand.vmem [shape: f32[64,4], index: 1, kind: input, shape index: {}]
  %s2 = inlined_call_operand.vmem [shape: f32[4,64], index: 2, kind: input, shape index: {}]
  %s3 = inlined_call_operand.vmem [shape: f32[2,64,256], index: 3, kind: output, shape index: {}]
  %s4 = sld [smem:[#allocation0]]
  $region22: #{se_layer.1} parent=0
    _
  %s6 = ssub.s32 1, %s4
  %s7 = scalar_select 0, %s6, %s4
  // Predicated region
  $region2: #{se_layer.1} parent=0 // pred_check
    _
  $region3: #{se_layer.1} parent=0 // pred_check_branch
    %9 = sbr.rel (0) target = $region5
  $region4: #{se_layer.1} parent=0 // pred_region
    _
  $region5: #{se_layer.1} parent=0 // pred_fallthru
    _
  // Predicated region
  $region6: #{se_layer.1} parent=0 // pred_check
    _
  $region7: #{se_layer.1} parent=0 // pred_check_branch
    %11 = sbr.rel (0) target = $region9
  $region8: #{se_layer.1} parent=0 // pred_region
    _
  $region9: #{se_layer.1} parent=0 // pred_fallthru
    _
  // Predicated region
  $region10: #{se_layer.1} parent=0 // pred_check
    _
  $region11: #{se_layer.1} parent=0 // pred_check_branch
    %13 = sbr.rel (0) target = $region13
  $region12: #{se_layer.1} parent=0 // pred_region
    _
  $region13: #{se_layer.1} parent=0 // pred_fallthru
    _
  %v14 = vld [vmem:[%s0] sm:$0xff]
  %v15 = vld [vmem:[%s0 + $0x8] sm:$0xff]
  %v16 = vld [vmem:[%s0 + $0x10] sm:$0xff]
  %v17 = vld [vmem:[%s0 + $0x18] sm:$0xff]
  %v18 = vld [vmem:[%s0 + $0x20] sm:$0xff]
  %v19 = vld [vmem:[%s0 + $0x28] sm:$0xff]
  %v20 = vld [vmem:[%s0 + $0x30] sm:$0xff]
  %v21 = vld [vmem:[%s0 + $0x38] sm:$0xff]
  %v22 = vld [vmem:[%s0 + $0x40] sm:$0xff]
  %v23 = vld [vmem:[%s0 + $0x48] sm:$0xff]
  %v24 = vld [vmem:[%s0 + $0x50] sm:$0xff]
  %v25 = vld [vmem:[%s0 + $0x58] sm:$0xff]
  %v26 = vld [vmem:[%s0 + $0x60] sm:$0xff]
  %v27 = vld [vmem:[%s0 + $0x68] sm:$0xff]
  %v28 = vld [vmem:[%s0 + $0x70] sm:$0xff]
  %v29 = vld [vmem:[%s0 + $0x78] sm:$0xff]
  %v30 = vld [vmem:[%s0 + $0x80] sm:$0xff]
  %v31 = vld [vmem:[%s0 + $0x88] sm:$0xff]
  %v32 = vld [vmem:[%s0 + $0x90] sm:$0xff]
  %v33 = vld [vmem:[%s0 + $0x98] sm:$0xff]
  %v34 = vld [vmem:[%s0 + $0xa0] sm:$0xff]
  %v35 = vld [vmem:[%s0 + $0xa8] sm:$0xff]
  %v36 = vld [vmem:[%s0 + $0xb0] sm:$0xff]
  %v37 = vld [vmem:[%s0 + $0xb8] sm:$0xff]
  %v38 = vld [vmem:[%s0 + $0xc0] sm:$0xff]
  %v39 = vld [vmem:[%s0 + $0xc8] sm:$0xff]
  %v40 = vld [vmem:[%s0 + $0xd0] sm:$0xff]
  %v41 = vld [vmem:[%s0 + $0xd8] sm:$0xff]
  %v42 = vld [vmem:[%s0 + $0xe0] sm:$0xff]
  %v43 = vld [vmem:[%s0 + $0xe8] sm:$0xff]
  %v44 = vld [vmem:[%s0 + $0xf0] sm:$0xff]
  %v45 = vld [vmem:[%s0 + $0xf8] sm:$0xff]
  %v46 = vadd.f32 %v14, %v15
  %47 = vadd.xlane.f32.xlu0 %v46
  %v48 = vpop.xlane.xlu0 %47
  %v49 = vadd.f32 %v16, %v17
  %50 = vadd.xlane.f32.xlu0 %v49
  %v51 = vpop.xlane.xlu0 %50
  %v52 = vadd.f32 %v18, %v19
  %53 = vadd.xlane.f32.xlu0 %v52
  %v54 = vpop.xlane.xlu0 %53
  %v55 = vadd.f32 %v20, %v21
  %56 = vadd.xlane.f32.xlu0 %v55
  %v57 = vpop.xlane.xlu0 %56
  %v58 = vadd.f32 %v22, %v23
  %59 = vadd.xlane.f32.xlu0 %v58
  %v60 = vpop.xlane.xlu0 %59
  %v61 = vadd.f32 %v24, %v25
  %62 = vadd.xlane.f32.xlu0 %v61
  %v63 = vpop.xlane.xlu0 %62
  %v64 = vadd.f32 %v26, %v27
  %65 = vadd.xlane.f32.xlu0 %v64
  %v66 = vpop.xlane.xlu0 %65
  %v67 = vadd.f32 %v28, %v29
  %68 = vadd.xlane.f32.xlu0 %v67
  %v69 = vpop.xlane.xlu0 %68
  %v70 = vadd.f32 %v30, %v31
  %71 = vadd.xlane.f32.xlu0 %v70
  %v72 = vpop.xlane.xlu0 %71
  %v73 = vadd.f32 %v32, %v33
  %74 = vadd.xlane.f32.xlu0 %v73
  %v75 = vpop.xlane.xlu0 %74
  %v76 = vadd.f32 %v34, %v35
  %77 = vadd.xlane.f32.xlu0 %v76
  %v78 = vpop.xlane.xlu0 %77
  %v79 = vadd.f32 %v36, %v37
  %80 = vadd.xlane.f32.xlu0 %v79
  %v81 = vpop.xlane.xlu0 %80
  %v82 = vadd.f32 %v38, %v39
  %83 = vadd.xlane.f32.xlu0 %v82
  %v84 = vpop.xlane.xlu0 %83
  %v85 = vadd.f32 %v40, %v41
  %86 = vadd.xlane.f32.xlu0 %v85
  %v87 = vpop.xlane.xlu0 %86
  %v88 = vadd.f32 %v42, %v43
  %89 = vadd.xlane.f32.xlu0 %v88
  %v90 = vpop.xlane.xlu0 %89
  %v91 = vadd.f32 %v44, %v45
  %92 = vadd.xlane.f32.xlu0 %v91
  %v93 = vpop.xlane.xlu0 %92
  %v94 = vld [vmem:[%s1] sm:$0xff]
  %v95 = vld [vmem:[%s1 + $0x8] sm:$0xff]
  %v96 = vld [vmem:[%s1 + $0x10] sm:$0xff]
  %v97 = vld [vmem:[%s1 + $0x18] sm:$0xff]
  %v98 = vld [vmem:[%s1 + $0x20] sm:$0xff]
  %v99 = vld [vmem:[%s1 + $0x28] sm:$0xff]
  %v100 = vld [vmem:[%s1 + $0x30] sm:$0xff]
  %v101 = vld [vmem:[%s1 + $0x38] sm:$0xff]
  %v118 = vlaneseq
  %v119 = vand.u32 %v118, 127
  %v120 = vlaneseq
  %v121 = vshrl.u32 %v120, 7
  %v122 = vsub.s32 %v119, %v121
  %v123 = vrot.slane %v48, %v122
  %v124 = vadd.s32 %v119, 4294967288
  %v125 = vlaneseq
  %v126 = vshrl.u32 %v125, 7
  %v127 = vsub.s32 %v124, %v126
  %v128 = vrot.slane %v51, %v127
  %vm129 = vcmask 130112
  %v130 = vsel %vm129, %v128, %v123
  %v131 = vadd.s32 %v119, 4294967280
  %v132 = vlaneseq
  %v133 = vshrl.u32 %v132, 7
  %v134 = vsub.s32 %v131, %v133
  %v135 = vrot.slane %v54, %v134
  %vm136 = vcmask 195712
  %v137 = vsel %vm136, %v135, %v130
  %v138 = vadd.s32 %v119, 4294967272
  %v139 = vlaneseq
  %v140 = vshrl.u32 %v139, 7
  %v141 = vsub.s32 %v138, %v140
  %v142 = vrot.slane %v57, %v141
  %vm143 = vcmask 261312
  %v144 = vsel %vm143, %v142, %v137
  %v145 = vadd.s32 %v119, 4294967264
  %v146 = vlaneseq
  %v147 = vshrl.u32 %v146, 7
  %v148 = vsub.s32 %v145, %v147
  %v149 = vrot.slane %v60, %v148
  %vm150 = vcmask 326912
  %v151 = vsel %vm150, %v149, %v144
  %v152 = vadd.s32 %v119, 4294967256
  %v153 = vlaneseq
  %v154 = vshrl.u32 %v153, 7
  %v155 = vsub.s32 %v152, %v154
  %v156 = vrot.slane %v63, %v155
  %vm157 = vcmask 392512
  %v158 = vsel %vm157, %v156, %v151
  %v159 = vadd.s32 %v119, 4294967248
  %v160 = vlaneseq
  %v161 = vshrl.u32 %v160, 7
  %v162 = vsub.s32 %v159, %v161
  %v163 = vrot.slane %v66, %v162
  %vm164 = vcmask 458112
  %v165 = vsel %vm164, %v163, %v158
  %v166 = vadd.s32 %v119, 4294967240
  %v167 = vlaneseq
  %v168 = vshrl.u32 %v167, 7
  %v169 = vsub.s32 %v166, %v168
  %v170 = vrot.slane %v69, %v169
  %vm171 = vcmask 523712
  %v172 = vsel %vm171, %v170, %v165
  %v173 = vlaneseq
  %v174 = vshrl.u32 %v173, 7
  %v175 = vsub.s32 %v119, %v174
  %v176 = vrot.slane %v72, %v175
  %v177 = vlaneseq
  %v178 = vshrl.u32 %v177, 7
  %v179 = vsub.s32 %v124, %v178
  %v180 = vrot.slane %v75, %v179
  %v181 = vsel %vm129, %v180, %v176
  %v182 = vlaneseq
  %v183 = vshrl.u32 %v182, 7
  %v184 = vsub.s32 %v131, %v183
  %v185 = vrot.slane %v78, %v184
  %v186 = vsel %vm136, %v185, %v181
  %v187 = vlaneseq
  %v188 = vshrl.u32 %v187, 7
  %v189 = vsub.s32 %v138, %v188
  %v190 = vrot.slane %v81, %v189
  %v191 = vsel %vm143, %v190, %v186
  %v192 = vlaneseq
  %v193 = vshrl.u32 %v192, 7
  %v194 = vsub.s32 %v145, %v193
  %v195 = vrot.slane %v84, %v194
  %v196 = vsel %vm150, %v195, %v191
  %v197 = vlaneseq
  %v198 = vshrl.u32 %v197, 7
  %v199 = vsub.s32 %v152, %v198
  %v200 = vrot.slane %v87, %v199
  %v201 = vsel %vm157, %v200, %v196
  %v202 = vlaneseq
  %v203 = vshrl.u32 %v202, 7
  %v204 = vsub.s32 %v159, %v203
  %v205 = vrot.slane %v90, %v204
  %v206 = vsel %vm164, %v205, %v201
  %v207 = vlaneseq
  %v208 = vshrl.u32 %v207, 7
  %v209 = vsub.s32 %v166, %v208
  %v210 = vrot.slane %v93, %v209
  %v211 = vsel %vm171, %v210, %v206
  %vm212 = vcmask 1041409
  %v213 = vsel %vm212, %v211, %v172
  %vm214 = vcmask 523264
  %v215 = vsel %vm214, %v213, 0
  %217 = vmatprep.subr.mxu0 0.0
  %218 = vmatpush1.msra.mxu0 %v94
  %219 = vmatprep.subr.mxu0 0.0
  %220 = vmatpush1.msra.mxu0 %v95
  %221 = vmatprep.subr.mxu0 0.0
  %222 = vmatpush1.msra.mxu0 %v96
  %223 = vmatprep.subr.mxu0 0.0
  %224 = vmatpush1.msra.mxu0 %v97
  %225 = vmatprep.subr.mxu0 0.0
  %226 = vmatpush1.msra.mxu0 %v98
  %227 = vmatprep.subr.mxu0 0.0
  %228 = vmatpush1.msra.mxu0 %v99
  %229 = vmatprep.subr.mxu0 0.0
  %230 = vmatpush1.msra.mxu0 %v100
  %231 = vmatprep.subr.mxu0 0.0
  %232 = vmatpush1.msra.mxu0 %v101
  %233 = vmatprep.subr.mxu0 0.0
  %234 = vmatpush1.msra.mxu0 0.0
  %235 = vmatprep.subr.mxu0 0.0
  %236 = vmatpush1.msra.mxu0 0.0
  %237 = vmatprep.subr.mxu0 0.0
  %238 = vmatpush1.msra.mxu0 0.0
  %239 = vmatprep.subr.mxu0 0.0
  %240 = vmatpush1.msra.mxu0 0.0
  %241 = vmatprep.subr.mxu0 0.0
  %242 = vmatpush1.msra.mxu0 0.0
  %243 = vmatprep.subr.mxu0 0.0
  %244 = vmatpush1.msra.mxu0 0.0
  %245 = vmatprep.subr.mxu0 0.0
  %246 = vmatpush1.msra.mxu0 0.0
  %247 = vmatprep.subr.mxu0 0.0
  %248 = vmatpush1.msra.mxu0 0.0
  %249 = vmatprep.subr.mxu0 0.0
  %250 = vmatpush1.msra.mxu0 0.0
  %251 = vmatprep.subr.mxu0 0.0
  %252 = vmatpush1.msra.mxu0 0.0
  %253 = vmatprep.subr.mxu0 0.0
  %254 = vmatpush1.msra.mxu0 0.0
  %255 = vmatprep.subr.mxu0 0.0
  %256 = vmatpush1.msra.mxu0 0.0
  %257 = vmatprep.subr.mxu0 0.0
  %258 = vmatpush1.msra.mxu0 0.0
  %259 = vmatprep.subr.mxu0 0.0
  %260 = vmatpush1.msra.mxu0 0.0
  %261 = vmatprep.subr.mxu0 0.0
  %262 = vmatpush1.msra.mxu0 0.0
  %263 = vmatprep.subr.mxu0 0.0
  %264 = vmatpush1.msra.mxu0 0.0
  %265 = vmatprep.subr.mxu0 0.0
  %266 = vmatpush1.msra.mxu0 0.0
  %267 = vmatprep.subr.mxu0 0.0
  %268 = vmatpush1.msra.mxu0 0.0
  %269 = vmatprep.subr.mxu0 0.0
  %270 = vmatpush1.msra.mxu0 0.0
  %271 = vmatprep.subr.mxu0 0.0
  %272 = vmatpush1.msra.mxu0 0.0
  %273 = vmatprep.subr.mxu0 0.0
  %274 = vmatpush1.msra.mxu0 0.0
  %275 = vmatprep.subr.mxu0 0.0
  %276 = vmatpush1.msra.mxu0 0.0
  %277 = vmatprep.subr.mxu0 0.0
  %278 = vmatpush1.msra.mxu0 0.0
  %279 = vmatprep.subr.mxu0 0.0
  %280 = vmatpush1.msra.mxu0 0.0
  %281 = vmatprep.mubr.f32.mxu0 0.0
  %282 = vmatmul.mubr.f32.gmra.mrb[0].mxu0 %v215
  %v283 = vpop.f32.mrb[0].mxu0
  %v284 = vadd.f32 0.0, %v283
  %v285 = vpop.f32.mrb[0].mxu0
  %286 = vdwg.mxu0
  %v287 = vmax.f32 %v284, 0.0
  %v288 = vld [vmem:[%s2] sm:$0xf]
  %vm289 = vcmask 31744
  %v291 = vsel %vm289, %v287, 0
  %vm293 = vcmask 1043456
  %v295 = vsel %vm293, %v288, 0
  %297 = vmatprep.subr.mxu0 0.0
  %298 = vmatpush1.msra.mxu0 %v295
  %299 = vmatprep.subr.mxu0 0.0
  %300 = vmatpush1.msra.mxu0 0.0
  %301 = vmatprep.subr.mxu0 0.0
  %302 = vmatpush1.msra.mxu0 0.0
  %303 = vmatprep.subr.mxu0 0.0
  %304 = vmatpush1.msra.mxu0 0.0
  %305 = vmatprep.subr.mxu0 0.0
  %306 = vmatpush1.msra.mxu0 0.0
  %307 = vmatprep.subr.mxu0 0.0
  %308 = vmatpush1.msra.mxu0 0.0
  %309 = vmatprep.subr.mxu0 0.0
  %310 = vmatpush1.msra.mxu0 0.0
  %311 = vmatprep.subr.mxu0 0.0
  %312 = vmatpush1.msra.mxu0 0.0
  %313 = vmatprep.subr.mxu0 0.0
  %314 = vmatpush1.msra.mxu0 0.0
  %315 = vmatprep.subr.mxu0 0.0
  %316 = vmatpush1.msra.mxu0 0.0
  %317 = vmatprep.subr.mxu0 0.0
  %318 = vmatpush1.msra.mxu0 0.0
  %319 = vmatprep.subr.mxu0 0.0
  %320 = vmatpush1.msra.mxu0 0.0
  %321 = vmatprep.subr.mxu0 0.0
  %322 = vmatpush1.msra.mxu0 0.0
  %323 = vmatprep.subr.mxu0 0.0
  %324 = vmatpush1.msra.mxu0 0.0
  %325 = vmatprep.subr.mxu0 0.0
  %326 = vmatpush1.msra.mxu0 0.0
  %327 = vmatprep.subr.mxu0 0.0
  %328 = vmatpush1.msra.mxu0 0.0
  %329 = vmatprep.subr.mxu0 0.0
  %330 = vmatpush1.msra.mxu0 0.0
  %331 = vmatprep.subr.mxu0 0.0
  %332 = vmatpush1.msra.mxu0 0.0
  %333 = vmatprep.subr.mxu0 0.0
  %334 = vmatpush1.msra.mxu0 0.0
  %335 = vmatprep.subr.mxu0 0.0
  %336 = vmatpush1.msra.mxu0 0.0
  %337 = vmatprep.subr.mxu0 0.0
  %338 = vmatpush1.msra.mxu0 0.0
  %339 = vmatprep.subr.mxu0 0.0
  %340 = vmatpush1.msra.mxu0 0.0
  %341 = vmatprep.subr.mxu0 0.0
  %342 = vmatpush1.msra.mxu0 0.0
  %343 = vmatprep.subr.mxu0 0.0
  %344 = vmatpush1.msra.mxu0 0.0
  %345 = vmatprep.subr.mxu0 0.0
  %346 = vmatpush1.msra.mxu0 0.0
  %347 = vmatprep.subr.mxu0 0.0
  %348 = vmatpush1.msra.mxu0 0.0
  %349 = vmatprep.subr.mxu0 0.0
  %350 = vmatpush1.msra.mxu0 0.0
  %351 = vmatprep.subr.mxu0 0.0
  %352 = vmatpush1.msra.mxu0 0.0
  %353 = vmatprep.subr.mxu0 0.0
  %354 = vmatpush1.msra.mxu0 0.0
  %355 = vmatprep.subr.mxu0 0.0
  %356 = vmatpush1.msra.mxu0 0.0
  %357 = vmatprep.subr.mxu0 0.0
  %358 = vmatpush1.msra.mxu0 0.0
  %359 = vmatprep.subr.mxu0 0.0
  %360 = vmatpush1.msra.mxu0 0.0
  %361 = vmatprep.mubr.f32.mxu0 0.0
  %362 = vmatmul.mubr.f32.gmra.mrb[0].mxu0 %v291
  %v363 = vpop.f32.mrb[0].mxu0
  %v364 = vadd.f32 0.0, %v363
  %v365 = vpop.f32.mrb[0].mxu0
  %366 = vdwg.mxu0
  %v367 = vxor.u32 %v364, 2147483648
  %v368 = vmul.f32 %v367, 1.442695
  %v369 = vpow.pop %v368
  %v370 = vadd.f32 %v369, 1.0
  %v371 = vrcp.pop %v370
  %v372 = vmul.f32 1.0, %v371
  %v373 = vlaneseq
  %v374 = vshrl.u32 %v373, 7
  %v375 = vsub.s32 0, %v374
  %v376 = vrot.slane %v372, %v375
  %378 = vbcast.lane.b32.xlu0 %v376, 256
  %v379 = vpop.permute.xlu0 %378
  %s381 = sor.u32 256, 8
  %382 = vbcast.lane.b32.xlu0 %v376, %s381
  %v383 = vpop.permute.xlu0 %382
  %s385 = sor.u32 256, 16
  %386 = vbcast.lane.b32.xlu0 %v376, %s385
  %v387 = vpop.permute.xlu0 %386
  %s389 = sor.u32 256, 24
  %390 = vbcast.lane.b32.xlu0 %v376, %s389
  %v391 = vpop.permute.xlu0 %390
  %s393 = sor.u32 256, 32
  %394 = vbcast.lane.b32.xlu0 %v376, %s393
  %v395 = vpop.permute.xlu0 %394
  %s397 = sor.u32 256, 40
  %398 = vbcast.lane.b32.xlu0 %v376, %s397
  %v399 = vpop.permute.xlu0 %398
  %s401 = sor.u32 256, 48
  %402 = vbcast.lane.b32.xlu0 %v376, %s401
  %v403 = vpop.permute.xlu0 %402
  %s405 = sor.u32 256, 56
  %406 = vbcast.lane.b32.xlu0 %v376, %s405
  %v407 = vpop.permute.xlu0 %406
  %v408 = vlaneseq
  %v409 = vshrl.u32 %v408, 7
  %v410 = vsub.s32 1, %v409
  %v411 = vrot.slane %v372, %v410
  %413 = vbcast.lane.b32.xlu0 %v411, 256
  %v414 = vpop.permute.xlu0 %413
  %s416 = sor.u32 256, 8
  %417 = vbcast.lane.b32.xlu0 %v411, %s416
  %v418 = vpop.permute.xlu0 %417
  %s420 = sor.u32 256, 16
  %421 = vbcast.lane.b32.xlu0 %v411, %s420
  %v422 = vpop.permute.xlu0 %421
  %s424 = sor.u32 256, 24
  %425 = vbcast.lane.b32.xlu0 %v411, %s424
  %v426 = vpop.permute.xlu0 %425
  %s428 = sor.u32 256, 32
  %429 = vbcast.lane.b32.xlu0 %v411, %s428
  %v430 = vpop.permute.xlu0 %429
  %s432 = sor.u32 256, 40
  %433 = vbcast.lane.b32.xlu0 %v411, %s432
  %v434 = vpop.permute.xlu0 %433
  %s436 = sor.u32 256, 48
  %437 = vbcast.lane.b32.xlu0 %v411, %s436
  %v438 = vpop.permute.xlu0 %437
  %s440 = sor.u32 256, 56
  %441 = vbcast.lane.b32.xlu0 %v411, %s440
  %v442 = vpop.permute.xlu0 %441
  %v443 = vmul.f32 %v14, %v379
  %v444 = vmul.f32 %v15, %v379
  %v445 = vmul.f32 %v16, %v383
  %v446 = vmul.f32 %v17, %v383
  %v447 = vmul.f32 %v18, %v387
  %v448 = vmul.f32 %v19, %v387
  %v449 = vmul.f32 %v20, %v391
  %v450 = vmul.f32 %v21, %v391
  %v451 = vmul.f32 %v22, %v395
  %v452 = vmul.f32 %v23, %v395
  %v453 = vmul.f32 %v24, %v399
  %v454 = vmul.f32 %v25, %v399
  %v455 = vmul.f32 %v26, %v403
  %v456 = vmul.f32 %v27, %v403
  %v457 = vmul.f32 %v28, %v407
  %v458 = vmul.f32 %v29, %v407
  %v459 = vmul.f32 %v30, %v414
  %v460 = vmul.f32 %v31, %v414
  %v461 = vmul.f32 %v32, %v418
  %v462 = vmul.f32 %v33, %v418
  %v463 = vmul.f32 %v34, %v422
  %v464 = vmul.f32 %v35, %v422
  %v465 = vmul.f32 %v36, %v426
  %v466 = vmul.f32 %v37, %v426
  %v467 = vmul.f32 %v38, %v430
  %v468 = vmul.f32 %v39, %v430
  %v469 = vmul.f32 %v40, %v434
  %v470 = vmul.f32 %v41, %v434
  %v471 = vmul.f32 %v42, %v438
  %v472 = vmul.f32 %v43, %v438
  %v473 = vmul.f32 %v44, %v442
  %v474 = vmul.f32 %v45, %v442
  %475 = vst [vmem:[%s3] sm:$0xff] %v443
  %476 = vst [vmem:[%s3 + $0x8] sm:$0xff] %v444
  %477 = vst [vmem:[%s3 + $0x10] sm:$0xff] %v445
  %478 = vst [vmem:[%s3 + $0x18] sm:$0xff] %v446
  %479 = vst [vmem:[%s3 + $0x20] sm:$0xff] %v447
  %480 = vst [vmem:[%s3 + $0x28] sm:$0xff] %v448
  %481 = vst [vmem:[%s3 + $0x30] sm:$0xff] %v449
  %482 = vst [vmem:[%s3 + $0x38] sm:$0xff] %v450
  %483 = vst [vmem:[%s3 + $0x40] sm:$0xff] %v451
  %484 = vst [vmem:[%s3 + $0x48] sm:$0xff] %v452
  %485 = vst [vmem:[%s3 + $0x50] sm:$0xff] %v453
  %486 = vst [vmem:[%s3 + $0x58] sm:$0xff] %v454
  %487 = vst [vmem:[%s3 + $0x60] sm:$0xff] %v455
  %488 = vst [vmem:[%s3 + $0x68] sm:$0xff] %v456
  %489 = vst [vmem:[%s3 + $0x70] sm:$0xff] %v457
  %490 = vst [vmem:[%s3 + $0x78] sm:$0xff] %v458
  %491 = vst [vmem:[%s3 + $0x80] sm:$0xff] %v459
  %492 = vst [vmem:[%s3 + $0x88] sm:$0xff] %v460
  %493 = vst [vmem:[%s3 + $0x90] sm:$0xff] %v461
  %494 = vst [vmem:[%s3 + $0x98] sm:$0xff] %v462
  %495 = vst [vmem:[%s3 + $0xa0] sm:$0xff] %v463
  %496 = vst [vmem:[%s3 + $0xa8] sm:$0xff] %v464
  %497 = vst [vmem:[%s3 + $0xb0] sm:$0xff] %v465
  %498 = vst [vmem:[%s3 + $0xb8] sm:$0xff] %v466
  %499 = vst [vmem:[%s3 + $0xc0] sm:$0xff] %v467
  %500 = vst [vmem:[%s3 + $0xc8] sm:$0xff] %v468
  %501 = vst [vmem:[%s3 + $0xd0] sm:$0xff] %v469
  %502 = vst [vmem:[%s3 + $0xd8] sm:$0xff] %v470
  %503 = vst [vmem:[%s3 + $0xe0] sm:$0xff] %v471
  %504 = vst [vmem:[%s3 + $0xe8] sm:$0xff] %v472
  %505 = vst [vmem:[%s3 + $0xf0] sm:$0xff] %v473
  %506 = vst [vmem:[%s3 + $0xf8] sm:$0xff] %v474
  // Predicated region
  $region14: #{se_layer.1} parent=0 // pred_check
    _
  $region15: #{se_layer.1} parent=0 // pred_check_branch
    %508 = sbr.rel (0) target = $region17
  $region16: #{se_layer.1} parent=0 // pred_region
    _
  $region17: #{se_layer.1} parent=0 // pred_fallthru
    _
  // Predicated region
  $region18: #{se_layer.1} parent=0 // pred_check
    _
  $region19: #{se_layer.1} parent=0 // pred_check_branch
    %510 = sbr.rel (0) target = $region21
  $region20: #{se_layer.1} parent=0 // pred_region
    _
  $region21: #{se_layer.1} parent=0 // pred_fallthru
    _

</llo_original>
